<compile_context>
chip_gen: v6e
topology: v6e:2x2x1
jax: 0.10.0
libtpu: 0.0.40
codegen_flags: <defaults>
</compile_context>

<pallas_src>
import jax
import jax.numpy as jnp
import numpy as np
from jax.experimental import pallas as pl
from jax.experimental.pallas import tpu as pltpu


def _pick_batch_tile(B, max_rows=512):
    """Batch tile: whole batch if small, else the largest multiple-of-8 divisor
    of B that is <= max_rows (keeps the (8,128) constraint on the output block).
    On v7x (64 MiB VMEM) pass a smaller max_rows if emb blocks get large."""
    if B <= max_rows:
        return B
    start = max_rows - (max_rows % 8)
    for t in range(start, 0, -8):
        if B % t == 0:
            return t
    return B


def _make_kernel(L, T, w_max, kernels, dim):
    """L: original sequence length; T: pooled-time extent (= L - min_w + 1);
    kernels/dim are static Python ints used to build the validity mask in-kernel
    (no captured array constants)."""
    K = len(kernels)
    KD = K * dim
    neg = float(np.finfo(np.float32).min)

    def kernel(emb_ref, conv_w_ref, conv_b_ref, fc_w_ref, fc_b_ref, out_ref):
        emb = emb_ref[...]                                    # (Bt, L_pad, E) bf16

        # im2col built ONCE (lane-concat of w_max shifted views): (Bt, T, w_max*E).
        # No per-iteration slice+reshape repacks; operand stays 3-D for the dot.
        im2col = jnp.concatenate(
            [emb[:, i:i + T, :] for i in range(w_max)], axis=-1)

        # Single conv matmul on the MXU: contraction depth = w_max*E (=128 here),
        # all widths' output channels at once (N = K*dim).  f32 accumulation.
        conv = jnp.einsum(
            'btf,fd->btd', im2col, conv_w_ref[...],
            preferred_element_type=jnp.float32)               # (Bt, T, KD) f32
        conv = conv + conv_b_ref[...].reshape(1, 1, KD)       # bias once, post-dot

        # Validity mask built from iotas + scalar constants only (no captured
        # array constants).  Column c belongs to width group k = c // dim and is
        # valid for t < L - w_k + 1.
        t_idx = jax.lax.broadcasted_iota(jnp.int32, (T, KD), 0)
        c_idx = jax.lax.broadcasted_iota(jnp.int32, (T, KD), 1)
        valid = None
        for k, w in enumerate(kernels):
            vl = L - w + 1                                     # Python int
            m = (c_idx >= k * dim) & (c_idx < (k + 1) * dim) & (t_idx < vl)
            valid = m if valid is None else (valid | m)

        # Mask positions beyond each width's valid conv length, then max-pool
        # over time (F.max_pool1d over the full temporal extent).
        conv = jnp.where(valid[None], conv, neg)
        pooled = jnp.max(conv, axis=1)                        # (Bt, KD) f32

        # TODO(synk): nn.Dropout is identity in eval mode; train-time random
        # dropout masking is not reproduced here.

        # Single FC matmul over the full concatenated feature (contraction K*dim).
        out = jnp.dot(pooled.astype(jnp.bfloat16), fc_w_ref[...],
                      preferred_element_type=jnp.float32)     # (Bt, C) f32
        # Note: num_class=5 keeps the output lane-narrow (masked stores); only
        # worth padding to 128 lanes once B*num_class is large.
        out_ref[...] = out + fc_b_ref[...]

    return kernel


def textcnn_forward(emb_x, conv_params, fc_w_t, fc_b, kernels,
                    *, batch_tile=512, interpret=False):
    """emb_x: (B, L, E) f32; conv_params: list of (W (w, E, dim), b (dim,))
    in `kernels` order; fc_w_t: (K*dim, num_class); fc_b: (num_class,)."""
    B, L, E = emb_x.shape
    K = len(kernels)
    dim = int(conv_params[0][0].shape[-1])
    KD = K * dim
    num_class = int(fc_b.shape[0])
    w_max = max(kernels)
    w_min = min(kernels)
    assert L >= w_max, "sequence shorter than the widest conv kernel"
    T = L - w_min + 1                      # longest valid conv length (pool extent)
    L_pad = T + w_max - 1                  # = L + (w_max - w_min)

    # ---- plain-JAX parameter / input re-layout (glue) -----------------------
    # Stacked im2col conv weight: zero-pad each (w, E, dim) to (w_max, E, dim),
    # flatten (width, E), stack the K widths along the output-channel axis.
    Ws, bs = [], []
    for (W, b), w in zip(conv_params, kernels):
        Wp = jnp.pad(W, ((0, w_max - w), (0, 0), (0, 0)))     # (w_max, E, dim)
        Ws.append(Wp.reshape(w_max * E, dim))
        bs.append(b)
    conv_w = jnp.concatenate(Ws, axis=1).astype(jnp.bfloat16)          # (w_max*E, KD)
    conv_b = jnp.concatenate(bs, axis=0).reshape(1, KD).astype(jnp.float32)

    fc_w = fc_w_t.astype(jnp.bfloat16)                                  # (KD, C)
    fc_bias = fc_b.reshape(1, num_class).astype(jnp.float32)

    # Zero-pad the sequence so one width-w_max window is in-bounds for every
    # pooled position; padded rows hit zero weight rows / get masked anyway.
    emb_pad = jnp.pad(emb_x, ((0, 0), (0, L_pad - L), (0, 0))).astype(jnp.bfloat16)

    B_TILE = _pick_batch_tile(B, batch_tile)
    assert B % B_TILE == 0
    grid = (B // B_TILE,)

    kernel = _make_kernel(L, T, w_max, tuple(kernels), dim)

    return pl.pallas_call(
        kernel,
        out_shape=jax.ShapeDtypeStruct((B, num_class), jnp.float32),
        grid=grid,
        in_specs=[
            pl.BlockSpec((B_TILE, L_pad, E), lambda i: (i, 0, 0)),   # emb (tiled on B)
            pl.BlockSpec((w_max * E, KD), lambda i: (0, 0)),         # conv weight
            pl.BlockSpec((1, KD), lambda i: (0, 0)),                 # conv bias
            pl.BlockSpec((KD, num_class), lambda i: (0, 0)),         # fc weight
            pl.BlockSpec((1, num_class), lambda i: (0, 0)),          # fc bias
        ],
        out_specs=pl.BlockSpec((B_TILE, num_class), lambda i: (i, 0)),
        compiler_params=pltpu.CompilerParams(
            dimension_semantics=("parallel",),        # batch axis -> both TCs on v7x
            vmem_limit_bytes=48 * 1024 * 1024,        # headroom; still < v7x 64 MiB
        ),
        interpret=interpret,
    )(emb_pad, conv_w, conv_b, fc_w, fc_bias)


def reference_forward(emb_x, conv_params, fc_w_t, fc_b):
    """Pure-JAX reference mirroring the kernel's precision choices
    (bf16-rounded matmul operands, f32 accumulation, eval-mode dropout)."""
    B = emb_x.shape[0]
    hi = jax.lax.Precision.HIGHEST
    emb = emb_x.astype(jnp.bfloat16).astype(jnp.float32)
    feats = []
    for W, b in conv_params:
        w, E, dim = W.shape
        Wb = W.astype(jnp.bfloat16).astype(jnp.float32)
        T_w = emb.shape[1] - w + 1
        acc = jnp.broadcast_to(b[None, None, :], (B, T_w, dim))
        for i in range(w):
            acc = acc + jnp.einsum('bte,ed->btd', emb[:, i:i + T_w, :], Wb[i],
                                   precision=hi)
        feats.append(jnp.max(acc, axis=1))
    feat = jnp.concatenate(feats, axis=-1)
    feat = feat.astype(jnp.bfloat16).astype(jnp.float32)
    fcw = fc_w_t.astype(jnp.bfloat16).astype(jnp.float32)
    return jnp.dot(feat, fcw, precision=hi) + fc_b[None, :]


if __name__ == "__main__":
    # Small, deterministic configuration consistent with the module's __init__.
    vocab_size = 20          # w2v rows
    emb_dim = 32             # w2v cols (E)
    dim = 8                  # conv out channels
    kernels = (2, 3, 4)      # conv window widths
    num_class = 5
    B, L = 2, 16             # batch, sequence length

    key = jax.random.PRNGKey(0)
    k_emb, k_x, k_fc_w, k_fc_b, *k_convs = jax.random.split(key, 4 + 2 * len(kernels))

    # Embedding table: (vocab_size + 2, emb_dim), deterministic synthetic init.
    embed_weight = jax.random.normal(k_emb, (vocab_size + 2, emb_dim), jnp.float32) * 0.1

    # Token ids: (B, L) int32 in [0, vocab_size + 2).
    x = jax.random.randint(k_x, (B, L), 0, vocab_size + 2, dtype=jnp.int32)

    # Conv params (torch layout (dim, 1, w, E) -> kernel layout (w, E, dim)).
    conv_params = []
    for wi, w in enumerate(kernels):
        W_torch = jax.random.normal(k_convs[2 * wi], (dim, 1, w, emb_dim), jnp.float32) * 0.1
        b = jax.random.normal(k_convs[2 * wi + 1], (dim,), jnp.float32) * 0.1
        W = jnp.transpose(W_torch[:, 0, :, :], (1, 2, 0))    # (w, E, dim)
        conv_params.append((W, b))

    # FC params (torch Linear weight (num_class, K*dim) -> pass transposed).
    fc_w_torch = jax.random.normal(k_fc_w, (num_class, len(kernels) * dim), jnp.float32) * 0.1
    fc_b = jax.random.normal(k_fc_b, (num_class,), jnp.float32) * 0.1
    fc_w_t = fc_w_torch.T                                     # (K*dim, num_class)

    # Embedding lookup (glue, plain JAX gather).
    emb_x = embed_weight[x]                                   # (B, L, E)

    out = textcnn_forward(emb_x, conv_params, fc_w_t, fc_b, kernels)
    out = jax.block_until_ready(out)

    ref = reference_forward(emb_x, conv_params, fc_w_t, fc_b)
    np.testing.assert_allclose(np.asarray(out), np.asarray(ref), rtol=1e-4, atol=1e-4)

    assert out.shape == (B, num_class)
    print("KERNEL_OK")
</pallas_src>

<mosaic_0001>
module attributes {stable_mosaic.version = 11 : i64} {
  func.func @kernel(%arg0: i32, %arg1: memref<2x18x32xbf16, #tpu.memory_space<vmem>>, %arg2: memref<128x24xbf16, #tpu.memory_space<vmem>>, %arg3: memref<1x24xf32, #tpu.memory_space<vmem>>, %arg4: memref<24x5xbf16, #tpu.memory_space<vmem>>, %arg5: memref<1x5xf32, #tpu.memory_space<vmem>>, %arg6: memref<2x5xf32, #tpu.memory_space<vmem>>) attributes {dimension_semantics = [#tpu.dimension_semantics<parallel>], iteration_bounds = array<i64: 1>, scalar_prefetch = 0 : i64, scratch_operands = 0 : i64, tpu.core_type = #tpu.core_type<tc>, window_params = [{transform_indices = @transform_0, window_bounds = array<i64: 2, 18, 32>}, {pipeline_mode = #tpu.pipeline_mode<synchronous>, transform_indices = @transform_1, window_bounds = array<i64: 128, 24>}, {pipeline_mode = #tpu.pipeline_mode<synchronous>, transform_indices = @transform_2, window_bounds = array<i64: 1, 24>}, {pipeline_mode = #tpu.pipeline_mode<synchronous>, transform_indices = @transform_3, window_bounds = array<i64: 24, 5>}, {pipeline_mode = #tpu.pipeline_mode<synchronous>, transform_indices = @transform_4, window_bounds = array<i64: 1, 5>}, {transform_indices = @transform_5, window_bounds = array<i64: 2, 5>}]} {
    %c0 = arith.constant 0 : index
    %c0_0 = arith.constant 0 : index
    %c0_1 = arith.constant 0 : index
    %0 = vector.load %arg1[%c0, %c0_0, %c0_1] : memref<2x18x32xbf16, #tpu.memory_space<vmem>>, vector<2x18x32xbf16>
    %1 = vector.extract_strided_slice %0 {offsets = [0, 0, 0], sizes = [2, 15, 32], strides = [1, 1, 1]} : vector<2x18x32xbf16> to vector<2x15x32xbf16>
    %2 = vector.extract_strided_slice %0 {offsets = [0, 1, 0], sizes = [2, 15, 32], strides = [1, 1, 1]} : vector<2x18x32xbf16> to vector<2x15x32xbf16>
    %3 = vector.extract_strided_slice %0 {offsets = [0, 2, 0], sizes = [2, 15, 32], strides = [1, 1, 1]} : vector<2x18x32xbf16> to vector<2x15x32xbf16>
    %4 = vector.extract_strided_slice %0 {offsets = [0, 3, 0], sizes = [2, 15, 32], strides = [1, 1, 1]} : vector<2x18x32xbf16> to vector<2x15x32xbf16>
    %5 = tpu.concatenate %1, %2, %3, %4 in 2 : vector<2x15x32xbf16>, vector<2x15x32xbf16>, vector<2x15x32xbf16>, vector<2x15x32xbf16> -> vector<2x15x128xbf16>
    %c0_2 = arith.constant 0 : index
    %c0_3 = arith.constant 0 : index
    %6 = vector.load %arg2[%c0_2, %c0_3] : memref<128x24xbf16, #tpu.memory_space<vmem>>, vector<128x24xbf16>
    "tpu.trace_start"() <{level = 10 : i32, message = "btf,fd->btd"}> : () -> ()
    %cst = arith.constant dense<0.000000e+00> : vector<2x15x24xf32>
    %7 = tpu.matmul %5, %6, %cst {dimension_numbers = #tpu.dot_dimension_numbers<[2], [0], [0, 1], [1], [0, 0, 0, 1, 1, 1], [], []>} : vector<2x15x128xbf16>, vector<128x24xbf16>, vector<2x15x24xf32> -> vector<2x15x24xf32>
    "tpu.trace_stop"() : () -> ()
    %c0_4 = arith.constant 0 : index
    %c0_5 = arith.constant 0 : index
    %8 = vector.load %arg3[%c0_4, %c0_5] : memref<1x24xf32, #tpu.memory_space<vmem>>, vector<1x24xf32>
    %9 = vector.shape_cast %8 : vector<1x24xf32> to vector<1x1x24xf32>
    %10 = vector.broadcast %9 : vector<1x1x24xf32> to vector<2x15x24xf32>
    %11 = arith.addf %7, %10 : vector<2x15x24xf32>
    %12 = tpu.iota {dimensions = array<i32: 0>} : vector<15x24xi32>
    %13 = tpu.iota {dimensions = array<i32: 1>} : vector<15x24xi32>
    %c0_i32 = arith.constant 0 : i32
    %14 = vector.broadcast %c0_i32 : i32 to vector<15x24xi32>
    %15 = arith.cmpi sge, %13, %14 : vector<15x24xi32>
    %c8_i32 = arith.constant 8 : i32
    %16 = vector.broadcast %c8_i32 : i32 to vector<15x24xi32>
    %17 = arith.cmpi slt, %13, %16 : vector<15x24xi32>
    %18 = arith.andi %15, %17 : vector<15x24xi1>
    %c15_i32 = arith.constant 15 : i32
    %19 = vector.broadcast %c15_i32 : i32 to vector<15x24xi32>
    %20 = arith.cmpi slt, %12, %19 : vector<15x24xi32>
    %21 = arith.andi %18, %20 : vector<15x24xi1>
    %c8_i32_6 = arith.constant 8 : i32
    %22 = vector.broadcast %c8_i32_6 : i32 to vector<15x24xi32>
    %23 = arith.cmpi sge, %13, %22 : vector<15x24xi32>
    %c16_i32 = arith.constant 16 : i32
    %24 = vector.broadcast %c16_i32 : i32 to vector<15x24xi32>
    %25 = arith.cmpi slt, %13, %24 : vector<15x24xi32>
    %26 = arith.andi %23, %25 : vector<15x24xi1>
    %c14_i32 = arith.constant 14 : i32
    %27 = vector.broadcast %c14_i32 : i32 to vector<15x24xi32>
    %28 = arith.cmpi slt, %12, %27 : vector<15x24xi32>
    %29 = arith.andi %26, %28 : vector<15x24xi1>
    %30 = arith.ori %21, %29 : vector<15x24xi1>
    %c16_i32_7 = arith.constant 16 : i32
    %31 = vector.broadcast %c16_i32_7 : i32 to vector<15x24xi32>
    %32 = arith.cmpi sge, %13, %31 : vector<15x24xi32>
    %c24_i32 = arith.constant 24 : i32
    %33 = vector.broadcast %c24_i32 : i32 to vector<15x24xi32>
    %34 = arith.cmpi slt, %13, %33 : vector<15x24xi32>
    %35 = arith.andi %32, %34 : vector<15x24xi1>
    %c13_i32 = arith.constant 13 : i32
    %36 = vector.broadcast %c13_i32 : i32 to vector<15x24xi32>
    %37 = arith.cmpi slt, %12, %36 : vector<15x24xi32>
    %38 = arith.andi %35, %37 : vector<15x24xi1>
    %39 = arith.ori %30, %38 : vector<15x24xi1>
    %40 = vector.shape_cast %39 : vector<15x24xi1> to vector<1x15x24xi1>
    %cst_8 = arith.constant -3.40282347E+38 : f32
    %41 = vector.shape_cast %40 : vector<1x15x24xi1> to vector<1x15x24xi1>
    %42 = vector.broadcast %41 : vector<1x15x24xi1> to vector<2x15x24xi1>
    %43 = vector.broadcast %cst_8 : f32 to vector<2x15x24xf32>
    %44 = arith.select %42, %11, %43 : vector<2x15x24xi1>, vector<2x15x24xf32>
    %cst_9 = arith.constant dense<0xFF800000> : vector<2x24xf32>
    %45 = vector.multi_reduction <maximumf>, %44, %cst_9 [1] : vector<2x15x24xf32> to vector<2x24xf32>
    %46 = arith.truncf %45 : vector<2x24xf32> to vector<2x24xbf16>
    %c0_10 = arith.constant 0 : index
    %c0_11 = arith.constant 0 : index
    %47 = vector.load %arg4[%c0_10, %c0_11] : memref<24x5xbf16, #tpu.memory_space<vmem>>, vector<24x5xbf16>
    %cst_12 = arith.constant dense<0.000000e+00> : vector<2x5xf32>
    %48 = tpu.matmul %46, %47, %cst_12 {dimension_numbers = #tpu.dot_dimension_numbers<[1], [0], [0], [1], [0, 0, 1, 1], [], []>} : vector<2x24xbf16>, vector<24x5xbf16>, vector<2x5xf32> -> vector<2x5xf32>
    %c0_13 = arith.constant 0 : index
    %c0_14 = arith.constant 0 : index
    %49 = vector.load %arg5[%c0_13, %c0_14] : memref<1x5xf32, #tpu.memory_space<vmem>>, vector<1x5xf32>
    %50 = vector.broadcast %49 : vector<1x5xf32> to vector<2x5xf32>
    %51 = arith.addf %48, %50 : vector<2x5xf32>
    %c0_15 = arith.constant 0 : index
    %c0_16 = arith.constant 0 : index
    %52 = vector.load %arg6[%c0_15, %c0_16] : memref<2x5xf32, #tpu.memory_space<vmem>>, vector<2x5xf32>
    tpu.vector_store %arg6[%c0_15, %c0_16], %51 {strides = array<i32>} : memref<2x5xf32, #tpu.memory_space<vmem>>, vector<2x5xf32>,
    return
  }
  func.func @transform_0(%arg0: i32) -> (i32, i32, i32) {
    %c0_i32 = arith.constant 0 : i32
    %c0_i32_0 = arith.constant 0 : i32
    %c0_i32_1 = arith.constant 0 : i32
    return %arg0, %c0_i32, %c0_i32_0 : i32, i32, i32
  }
  func.func @transform_1(%arg0: i32) -> (i32, i32) {
    %c0_i32 = arith.constant 0 : i32
    %c0_i32_0 = arith.constant 0 : i32
    %c0_i32_1 = arith.constant 0 : i32
    return %c0_i32, %c0_i32_0 : i32, i32
  }
  func.func @transform_2(%arg0: i32) -> (i32, i32) {
    %c0_i32 = arith.constant 0 : i32
    %c0_i32_0 = arith.constant 0 : i32
    %c0_i32_1 = arith.constant 0 : i32
    return %c0_i32, %c0_i32_0 : i32, i32
  }
  func.func @transform_3(%arg0: i32) -> (i32, i32) {
    %c0_i32 = arith.constant 0 : i32
    %c0_i32_0 = arith.constant 0 : i32
    %c0_i32_1 = arith.constant 0 : i32
    return %c0_i32, %c0_i32_0 : i32, i32
  }
  func.func @transform_4(%arg0: i32) -> (i32, i32) {
    %c0_i32 = arith.constant 0 : i32
    %c0_i32_0 = arith.constant 0 : i32
    %c0_i32_1 = arith.constant 0 : i32
    return %c0_i32, %c0_i32_0 : i32, i32
  }
  func.func @transform_5(%arg0: i32) -> (i32, i32) {
    %c0_i32 = arith.constant 0 : i32
    %c0_i32_0 = arith.constant 0 : i32
    return %arg0, %c0_i32 : i32, i32
  }
}

</mosaic_0001>

<llo_original>
// kernel: tpu_custom_call.1
$region0: #{tpu_custom_call.1}
  #allocation0 [shape = 'u32[]', space=smem, size = 0x4, offset = 0x4, fixed_abs, tag = 'smem constant byte address 0x4 - core index']
  #allocation1 [shape = 'u32[144,128]{1,0:T(1,128)}', space=vmem, size = 0x12000, scoped, tag = 'internal scratch']
  %s0 = inlined_call_operand.vmem [shape: bf16[2,18,32], index: 0, kind: input, shape index: {}]
  %s1 = inlined_call_operand.vmem [shape: bf16[128,24], index: 1, kind: input, shape index: {}]
  %s2 = inlined_call_operand.vmem [shape: f32[1,24], index: 2, kind: input, shape index: {}]
  %s3 = inlined_call_operand.vmem [shape: bf16[24,5], index: 3, kind: input, shape index: {}]
  %s4 = inlined_call_operand.vmem [shape: f32[1,5], index: 4, kind: input, shape index: {}]
  %s5 = inlined_call_operand.hbm [shape: f32[2,5], index: 5, kind: output, shape index: {}]
  %s6 = sld [smem:[#allocation0]]
  $region30: #{tpu_custom_call.1} parent=0
    _
  %s8 = ssub.s32 1, %s6
  %s9 = scalar_select 0, %s8, %s6
  $region1: #{tpu_custom_call.1} parent=0
    #allocation2 [shape = 'u8[1024]{0}', space=vmem, size = 0x400, scoped, tag = 'output window, operand 0, single buffered']
    #allocation3 [shape = 's32[1]{0}', space=sflag, size = 0x4, scoped, tag = 'scoped memory for tpu_custom_call.1']
    %10 = vsyncpa [#allocation3], 0
    // Predicated region
    $region2: #{tpu_custom_call.1} parent=1 // pred_check
      _
    $region3: #{tpu_custom_call.1} parent=1 // pred_check_branch
      %12 = sbr.rel (0) target = $region5
    $region4: #{tpu_custom_call.1} parent=1 // pred_region
      _
    $region5: #{tpu_custom_call.1} parent=1 // pred_fallthru
      _
    // Predicated region
    $region6: #{tpu_custom_call.1} parent=1 // pred_check
      _
    $region7: #{tpu_custom_call.1} parent=1 // pred_check_branch
      %14 = sbr.rel (0) target = $region9
    $region8: #{tpu_custom_call.1} parent=1 // pred_region
      _
    $region9: #{tpu_custom_call.1} parent=1 // pred_fallthru
      _
    // Predicated region
    $region10: #{tpu_custom_call.1} parent=1 // pred_check
      _
    $region11: #{tpu_custom_call.1} parent=1 // pred_check_branch
      %16 = sbr.rel (0) target = $region13
    $region12: #{tpu_custom_call.1} parent=1 // pred_region
      _
    $region13: #{tpu_custom_call.1} parent=1 // pred_fallthru
      _
    // Predicated region
    $region14: #{tpu_custom_call.1} parent=1 // pred_check
      _
    $region15: #{tpu_custom_call.1} parent=1 // pred_check_branch
      %18 = sbr.rel (0) target = $region17
    $region16: #{tpu_custom_call.1} parent=1 // pred_region
      _
    $region17: #{tpu_custom_call.1} parent=1 // pred_fallthru
      _
    // Predicated region
    $region18: #{tpu_custom_call.1} parent=1 // pred_check
      _
    $region19: #{tpu_custom_call.1} parent=1 // pred_check_branch
      %20 = sbr.rel (0) target = $region21
    $region20: #{tpu_custom_call.1} parent=1 // pred_region
      _
    $region21: #{tpu_custom_call.1} parent=1 // pred_fallthru
      _
    %v22 = vld [vmem:[%s0] sm:$0xf]
    %v23 = vld [vmem:[%s0 + $0x4] sm:$0xf]
    %v24 = vld [vmem:[%s0 + $0x8] sm:$0x1]
    %v25 = vld [vmem:[%s0 + $0xc] sm:$0xf]
    %v26 = vld [vmem:[%s0 + $0x10] sm:$0xf]
    %v27 = vld [vmem:[%s0 + $0x14] sm:$0x1]
    %v32 = vunpack.c.l.b16 %v22
    %v33 = vunpack.c.l.b16 %v23
    %v34 = vunpack.c.l.b16 %v25
    %v35 = vunpack.c.l.b16 %v26
    %v36 = vpack.c.b16 %v33, %v32
    %v37 = vpack.c.b16 %v35, %v34
    %v39 = vshrl.u32 %v36, 16
    %v41 = vshll.u32 %v36, 16
    %v43 = vrot.slane %v41, 1
    %v44 = vor.u32 %v39, %v43
    %v46 = vshrl.u32 %v37, 16
    %v48 = vshll.u32 %v37, 16
    %v50 = vrot.slane %v48, 1
    %v51 = vor.u32 %v46, %v50
    %52 = vrot.lane.b32.xlu0 %v44, 32
    %v53 = vpop.permute.xlu0 %52
    %54 = vrot.lane.b32.xlu0 %v51, 32
    %v55 = vpop.permute.xlu0 %54
    %v58 = vunpack.c.l.b16 %v24
    %v59 = vunpack.c.l.b16 %v27
    %v60 = vpack.c.b16 %v58, %v58
    %v61 = vpack.c.b16 %v59, %v59
    %vm62 = vcmask 1046528
    %v63 = vrot.slane %v36, 1
    %v64 = vrot.slane %v60, 1
    %v65 = vsel %vm62, %v63, %v64
    %v66 = vrot.slane %v37, 1
    %v67 = vrot.slane %v61, 1
    %v68 = vsel %vm62, %v66, %v67
    %69 = vrot.lane.b32.xlu0 %v65, 64
    %v70 = vpop.permute.xlu0 %69
    %71 = vrot.lane.b32.xlu0 %v68, 64
    %v72 = vpop.permute.xlu0 %71
    %vm73 = vsmask.f32 6400
    %v74 = vrot.slane %v39, 1
    %v75 = vrot.slane %v41, 2
    %v76 = vor.u32 %v74, %v75
    %v78 = vshrl.u32 %v60, 16
    %v80 = vrot.slane %v78, 1
    %v81 = vshll.u32 %v60, 16
    %v83 = vrot.slane %v81, 2
    %v84 = vor.u32 %v80, %v83
    %v85 = vsel %vm73, %v76, %v84
    %v86 = vrot.slane %v46, 1
    %v87 = vrot.slane %v48, 2
    %v88 = vor.u32 %v86, %v87
    %v90 = vshrl.u32 %v61, 16
    %v92 = vrot.slane %v90, 1
    %v93 = vshll.u32 %v61, 16
    %v95 = vrot.slane %v93, 2
    %v96 = vor.u32 %v92, %v95
    %v97 = vsel %vm73, %v88, %v96
    %98 = vrot.lane.b32.xlu0 %v85, 96
    %v99 = vpop.permute.xlu0 %98
    %100 = vrot.lane.b32.xlu0 %v97, 96
    %v101 = vpop.permute.xlu0 %100
    %vm102 = vcmask 261120
    %v104 = vsel %vm102, %v36, %v53
    %v106 = vsel %vm102, %v37, %v55
    %vm107 = vcmask 523264
    %v109 = vsel %vm107, %v104, %v70
    %v111 = vsel %vm107, %v106, %v72
    %vm112 = vcmask 785408
    %v114 = vsel %vm112, %v109, %v99
    %v116 = vsel %vm112, %v111, %v101
    %v117 = vld [vmem:[%s1] sm:$0xf]
    %v118 = vld [vmem:[%s1 + $0x4] sm:$0xf]
    %v119 = vld [vmem:[%s1 + $0x8] sm:$0xf]
    %v120 = vld [vmem:[%s1 + $0xc] sm:$0xf]
    %v121 = vld [vmem:[%s1 + $0x10] sm:$0xf]
    %v122 = vld [vmem:[%s1 + $0x14] sm:$0xf]
    %v123 = vld [vmem:[%s1 + $0x18] sm:$0xf]
    %v124 = vld [vmem:[%s1 + $0x1c] sm:$0xf]
    %v125 = vld [vmem:[%s1 + $0x20] sm:$0xf]
    %v126 = vld [vmem:[%s1 + $0x24] sm:$0xf]
    %v127 = vld [vmem:[%s1 + $0x28] sm:$0xf]
    %v128 = vld [vmem:[%s1 + $0x2c] sm:$0xf]
    %v129 = vld [vmem:[%s1 + $0x30] sm:$0xf]
    %v130 = vld [vmem:[%s1 + $0x34] sm:$0xf]
    %v131 = vld [vmem:[%s1 + $0x38] sm:$0xf]
    %v132 = vld [vmem:[%s1 + $0x3c] sm:$0xf]
    %v133 = vld [vmem:[%s2] sm:$0x1]
    %v135 = vlaneseq
    %v136 = vshrl.u32 %v135, 7
    %v137 = vsub.s32 0, %v136
    %v138 = vrot.slane %v133, %v137
    %v141 = vcombine.high %v114, %v114
    %v143 = vunpack.c.l.s4 1966171168
    %v144 = vunpack.c.0.s8 %v143
    %v145 = vlaneseq
    %v146 = vshrl.u32 %v145, 7
    %v147 = vsub.s32 %v144, %v146
    %v148 = vrot.slane %v114, %v147
    %v150 = vunpack.c.l.s4 1966171168
    %v151 = vunpack.c.0.s8 %v150
    %v152 = vlaneseq
    %v153 = vshrl.u32 %v152, 7
    %v154 = vsub.s32 %v151, %v153
    %v155 = vrot.slane %v141, %v154
    %v156 = vcombine.high %v148, %v148
    %v157 = vcombine.high %v155, %v155
    %v159 = vunpack.c.l.s4 1966171168
    %v160 = vunpack.c.0.s8 %v159
    %v161 = vlaneseq
    %v162 = vshrl.u32 %v161, 7
    %v163 = vsub.s32 %v160, %v162
    %v164 = vrot.slane %v148, %v163
    %v166 = vunpack.c.l.s4 1966171168
    %v167 = vunpack.c.0.s8 %v166
    %v168 = vlaneseq
    %v169 = vshrl.u32 %v168, 7
    %v170 = vsub.s32 %v167, %v169
    %v171 = vrot.slane %v155, %v170
    %v173 = vunpack.c.l.s4 1966171168
    %v174 = vunpack.c.0.s8 %v173
    %v175 = vlaneseq
    %v176 = vshrl.u32 %v175, 7
    %v177 = vsub.s32 %v174, %v176
    %v178 = vrot.slane %v156, %v177
    %v180 = vunpack.c.l.s4 1966171168
    %v181 = vunpack.c.0.s8 %v180
    %v182 = vlaneseq
    %v183 = vshrl.u32 %v182, 7
    %v184 = vsub.s32 %v181, %v183
    %v185 = vrot.slane %v157, %v184
    %v186 = vcombine.high %v164, %v164
    %v187 = vcombine.high %v171, %v171
    %v188 = vcombine.high %v178, %v178
    %v189 = vcombine.high %v185, %v185
    %v190 = vcombine.high %v116, %v116
    %v192 = vunpack.c.l.s4 1966171168
    %v193 = vunpack.c.0.s8 %v192
    %v194 = vlaneseq
    %v195 = vshrl.u32 %v194, 7
    %v196 = vsub.s32 %v193, %v195
    %v197 = vrot.slane %v116, %v196
    %v199 = vunpack.c.l.s4 1966171168
    %v200 = vunpack.c.0.s8 %v199
    %v201 = vlaneseq
    %v202 = vshrl.u32 %v201, 7
    %v203 = vsub.s32 %v200, %v202
    %v204 = vrot.slane %v190, %v203
    %v205 = vcombine.high %v197, %v197
    %v206 = vcombine.high %v204, %v204
    %v208 = vunpack.c.l.s4 1966171168
    %v209 = vunpack.c.0.s8 %v208
    %v210 = vlaneseq
    %v211 = vshrl.u32 %v210, 7
    %v212 = vsub.s32 %v209, %v211
    %v213 = vrot.slane %v197, %v212
    %v215 = vunpack.c.l.s4 1966171168
    %v216 = vunpack.c.0.s8 %v215
    %v217 = vlaneseq
    %v218 = vshrl.u32 %v217, 7
    %v219 = vsub.s32 %v216, %v218
    %v220 = vrot.slane %v204, %v219
    %v222 = vunpack.c.l.s4 1966171168
    %v223 = vunpack.c.0.s8 %v222
    %v224 = vlaneseq
    %v225 = vshrl.u32 %v224, 7
    %v226 = vsub.s32 %v223, %v225
    %v227 = vrot.slane %v205, %v226
    %v229 = vunpack.c.l.s4 1966171168
    %v230 = vunpack.c.0.s8 %v229
    %v231 = vlaneseq
    %v232 = vshrl.u32 %v231, 7
    %v233 = vsub.s32 %v230, %v232
    %v234 = vrot.slane %v206, %v233
    %v235 = vcombine.high %v213, %v213
    %v236 = vcombine.high %v220, %v220
    %v237 = vcombine.high %v227, %v227
    %v238 = vcombine.high %v234, %v234
    %v239 = vunpack.i.l.s16 %v164
    %v240 = vunpack.i.h.s16 %v164
    %v241 = vunpack.i.l.s16 %v178
    %v242 = vunpack.i.h.s16 %v178
    %v243 = vunpack.i.l.s16 %v186
    %v244 = vunpack.i.h.s16 %v186
    %v245 = vunpack.i.l.s16 %v188
    %v246 = vunpack.i.h.s16 %v188
    %v247 = vunpack.i.l.s16 %v171
    %v248 = vunpack.i.h.s16 %v171
    %v249 = vunpack.i.l.s16 %v185
    %v250 = vunpack.i.h.s16 %v185
    %v251 = vunpack.i.l.s16 %v187
    %v252 = vunpack.i.h.s16 %v187
    %v253 = vunpack.i.l.s16 %v189
    %v254 = vunpack.i.l.s16 %v213
    %v255 = vunpack.i.h.s16 %v213
    %v256 = vunpack.i.l.s16 %v227
    %v257 = vunpack.i.h.s16 %v227
    %v258 = vunpack.i.l.s16 %v235
    %v259 = vunpack.i.h.s16 %v235
    %v260 = vunpack.i.l.s16 %v237
    %v261 = vunpack.i.h.s16 %v237
    %v262 = vunpack.i.l.s16 %v220
    %v263 = vunpack.i.h.s16 %v220
    %v264 = vunpack.i.l.s16 %v234
    %v265 = vunpack.i.h.s16 %v234
    %v266 = vunpack.i.l.s16 %v236
    %v267 = vunpack.i.h.s16 %v236
    %v268 = vunpack.i.l.s16 %v238
    %v269 = vcombine.high %v138, %v138
    %v271 = vunpack.c.l.s4 1966171168
    %v272 = vunpack.c.0.s8 %v271
    %v273 = vlaneseq
    %v274 = vshrl.u32 %v273, 7
    %v275 = vsub.s32 %v272, %v274
    %v276 = vrot.slane %v138, %v275
    %v278 = vunpack.c.l.s4 1966171168
    %v279 = vunpack.c.0.s8 %v278
    %v280 = vlaneseq
    %v281 = vshrl.u32 %v280, 7
    %v282 = vsub.s32 %v279, %v281
    %v283 = vrot.slane %v269, %v282
    %v284 = vcombine.high %v276, %v276
    %v285 = vcombine.high %v283, %v283
    %v287 = vunpack.c.l.s4 1966171168
    %v288 = vunpack.c.0.s8 %v287
    %v289 = vlaneseq
    %v290 = vshrl.u32 %v289, 7
    %v291 = vsub.s32 %v288, %v290
    %v292 = vrot.slane %v276, %v291
    %v294 = vunpack.c.l.s4 1966171168
    %v295 = vunpack.c.0.s8 %v294
    %v296 = vlaneseq
    %v297 = vshrl.u32 %v296, 7
    %v298 = vsub.s32 %v295, %v297
    %v299 = vrot.slane %v283, %v298
    %v301 = vunpack.c.l.s4 1966171168
    %v302 = vunpack.c.0.s8 %v301
    %v303 = vlaneseq
    %v304 = vshrl.u32 %v303, 7
    %v305 = vsub.s32 %v302, %v304
    %v306 = vrot.slane %v284, %v305
    %v308 = vunpack.c.l.s4 1966171168
    %v309 = vunpack.c.0.s8 %v308
    %v310 = vlaneseq
    %v311 = vshrl.u32 %v310, 7
    %v312 = vsub.s32 %v309, %v311
    %v313 = vrot.slane %v285, %v312
    %v314 = vcombine.high %v292, %v292
    %v315 = vcombine.high %v299, %v299
    %v316 = vcombine.high %v306, %v306
    %v317 = vcombine.high %v313, %v313
    %v318 = vpack.i.b16 %v240, %v239
    %v319 = vpack.i.b16 %v242, %v241
    %v320 = vpack.i.b16 %v244, %v243
    %v321 = vpack.i.b16 %v246, %v245
    %v322 = vpack.i.b16 %v248, %v247
    %v323 = vpack.i.b16 %v250, %v249
    %v324 = vpack.i.b16 %v252, %v251
    %v325 = vpack.i.b16 %v254, %v253
    %v326 = vpack.i.b16 %v256, %v255
    %v327 = vpack.i.b16 %v258, %v257
    %v328 = vpack.i.b16 %v260, %v259
    %v329 = vpack.i.b16 %v262, %v261
    %v330 = vpack.i.b16 %v264, %v263
    %v331 = vpack.i.b16 %v266, %v265
    %v332 = vpack.i.b16 %v268, %v267
    %v333 = vcombine.low %v318, %v319
    %v334 = vcombine.low %v320, %v321
    %v335 = vcombine.low %v322, %v323
    %v336 = vcombine.low %v324, %v325
    %v338 = vunpack.c.l.s4 1966171168
    %v339 = vunpack.c.0.s8 %v338
    %v340 = vlaneseq
    %v341 = vshrl.u32 %v340, 7
    %v342 = vsub.s32 %v339, %v341
    %v343 = vrot.slane %v333, %v342
    %v345 = vunpack.c.l.s4 1966171168
    %v346 = vunpack.c.0.s8 %v345
    %v347 = vlaneseq
    %v348 = vshrl.u32 %v347, 7
    %v349 = vsub.s32 %v346, %v348
    %v350 = vrot.slane %v334, %v349
    %v352 = vunpack.c.l.s4 1966171168
    %v353 = vunpack.c.0.s8 %v352
    %v354 = vlaneseq
    %v355 = vshrl.u32 %v354, 7
    %v356 = vsub.s32 %v353, %v355
    %v357 = vrot.slane %v335, %v356
    %v359 = vunpack.c.l.s4 1966171168
    %v360 = vunpack.c.0.s8 %v359
    %v361 = vlaneseq
    %v362 = vshrl.u32 %v361, 7
    %v363 = vsub.s32 %v360, %v362
    %v364 = vrot.slane %v336, %v363
    %v365 = vcombine.low %v343, %v350
    %v366 = vcombine.low %v357, %v364
    %v368 = vunpack.c.l.s4 1966171168
    %v369 = vunpack.c.0.s8 %v368
    %v370 = vlaneseq
    %v371 = vshrl.u32 %v370, 7
    %v372 = vsub.s32 %v369, %v371
    %v373 = vrot.slane %v365, %v372
    %v375 = vunpack.c.l.s4 1966171168
    %v376 = vunpack.c.0.s8 %v375
    %v377 = vlaneseq
    %v378 = vshrl.u32 %v377, 7
    %v379 = vsub.s32 %v376, %v378
    %v380 = vrot.slane %v366, %v379
    %v381 = vcombine.low %v373, %v380
    %v382 = vcombine.low %v326, %v327
    %v383 = vcombine.low %v328, %v329
    %v384 = vcombine.low %v330, %v331
    %v386 = vunpack.c.l.s4 1966171168
    %v387 = vunpack.c.0.s8 %v386
    %v388 = vlaneseq
    %v389 = vshrl.u32 %v388, 7
    %v390 = vsub.s32 %v387, %v389
    %v391 = vrot.slane %v382, %v390
    %v393 = vunpack.c.l.s4 1966171168
    %v394 = vunpack.c.0.s8 %v393
    %v395 = vlaneseq
    %v396 = vshrl.u32 %v395, 7
    %v397 = vsub.s32 %v394, %v396
    %v398 = vrot.slane %v383, %v397
    %v400 = vunpack.c.l.s4 1966171168
    %v401 = vunpack.c.0.s8 %v400
    %v402 = vlaneseq
    %v403 = vshrl.u32 %v402, 7
    %v404 = vsub.s32 %v401, %v403
    %v405 = vrot.slane %v384, %v404
    %v407 = vunpack.c.l.s4 1966171168
    %v408 = vunpack.c.0.s8 %v407
    %v409 = vlaneseq
    %v410 = vshrl.u32 %v409, 7
    %v411 = vsub.s32 %v408, %v410
    %v412 = vrot.slane %v332, %v411
    %v413 = vcombine.low %v391, %v398
    %v414 = vcombine.low %v405, %v412
    %v416 = vunpack.c.l.s4 1966171168
    %v417 = vunpack.c.0.s8 %v416
    %v418 = vlaneseq
    %v419 = vshrl.u32 %v418, 7
    %v420 = vsub.s32 %v417, %v419
    %v421 = vrot.slane %v413, %v420
    %v423 = vunpack.c.l.s4 1966171168
    %v424 = vunpack.c.0.s8 %v423
    %v425 = vlaneseq
    %v426 = vshrl.u32 %v425, 7
    %v427 = vsub.s32 %v424, %v426
    %v428 = vrot.slane %v414, %v427
    %v429 = vcombine.low %v421, %v428
    %v448 = vunpack.c.l.b16 %v117
    %v449 = vunpack.c.l.b16 %v118
    %v450 = vunpack.c.l.b16 %v119
    %v451 = vunpack.c.l.b16 %v120
    %v452 = vunpack.c.l.b16 %v121
    %v453 = vunpack.c.l.b16 %v122
    %v454 = vunpack.c.l.b16 %v123
    %v455 = vunpack.c.l.b16 %v124
    %v456 = vunpack.c.l.b16 %v125
    %v457 = vunpack.c.l.b16 %v126
    %v458 = vunpack.c.l.b16 %v127
    %v459 = vunpack.c.l.b16 %v128
    %v460 = vunpack.c.l.b16 %v129
    %v461 = vunpack.c.l.b16 %v130
    %v462 = vunpack.c.l.b16 %v131
    %v463 = vunpack.c.l.b16 %v132
    %v464 = vpack.c.b16 %v449, %v448
    %v465 = vpack.c.b16 %v451, %v450
    %v466 = vpack.c.b16 %v453, %v452
    %v467 = vpack.c.b16 %v455, %v454
    %v468 = vpack.c.b16 %v457, %v456
    %v469 = vpack.c.b16 %v459, %v458
    %v470 = vpack.c.b16 %v461, %v460
    %v471 = vpack.c.b16 %v463, %v462
    %v480 = vcombine.low %v292, %v306
    %v481 = vcombine.low %v314, %v316
    %v482 = vcombine.low %v299, %v313
    %v483 = vcombine.low %v315, %v317
    %v485 = vunpack.c.l.s4 1966171168
    %v486 = vunpack.c.0.s8 %v485
    %v487 = vlaneseq
    %v488 = vshrl.u32 %v487, 7
    %v489 = vsub.s32 %v486, %v488
    %v490 = vrot.slane %v480, %v489
    %v492 = vunpack.c.l.s4 1966171168
    %v493 = vunpack.c.0.s8 %v492
    %v494 = vlaneseq
    %v495 = vshrl.u32 %v494, 7
    %v496 = vsub.s32 %v493, %v495
    %v497 = vrot.slane %v481, %v496
    %v499 = vunpack.c.l.s4 1966171168
    %v500 = vunpack.c.0.s8 %v499
    %v501 = vlaneseq
    %v502 = vshrl.u32 %v501, 7
    %v503 = vsub.s32 %v500, %v502
    %v504 = vrot.slane %v482, %v503
    %v506 = vunpack.c.l.s4 1966171168
    %v507 = vunpack.c.0.s8 %v506
    %v508 = vlaneseq
    %v509 = vshrl.u32 %v508, 7
    %v510 = vsub.s32 %v507, %v509
    %v511 = vrot.slane %v483, %v510
    %v512 = vcombine.low %v490, %v497
    %v513 = vcombine.low %v504, %v511
    %v515 = vunpack.c.l.s4 1966171168
    %v516 = vunpack.c.0.s8 %v515
    %v517 = vlaneseq
    %v518 = vshrl.u32 %v517, 7
    %v519 = vsub.s32 %v516, %v518
    %v520 = vrot.slane %v512, %v519
    %v522 = vunpack.c.l.s4 1966171168
    %v523 = vunpack.c.0.s8 %v522
    %v524 = vlaneseq
    %v525 = vshrl.u32 %v524, 7
    %v526 = vsub.s32 %v523, %v525
    %v527 = vrot.slane %v513, %v526
    %v528 = vcombine.low %v520, %v527
    %v529 = vcombine.low %v315, %v292
    %v531 = vunpack.c.l.s4 1966171168
    %v532 = vunpack.c.0.s8 %v531
    %v533 = vlaneseq
    %v534 = vshrl.u32 %v533, 7
    %v535 = vsub.s32 %v532, %v534
    %v536 = vrot.slane %v529, %v535
    %v537 = vcombine.low %v504, %v536
    %v539 = vunpack.c.l.s4 1966171168
    %v540 = vunpack.c.0.s8 %v539
    %v541 = vlaneseq
    %v542 = vshrl.u32 %v541, 7
    %v543 = vsub.s32 %v540, %v542
    %v544 = vrot.slane %v537, %v543
    %v545 = vcombine.low %v520, %v544
    %v546 = vcombine.low %v306, %v314
    %v547 = vcombine.low %v316, %v299
    %v548 = vcombine.low %v313, %v315
    %v549 = vcombine.low %v317, %v292
    %v551 = vunpack.c.l.s4 1966171168
    %v552 = vunpack.c.0.s8 %v551
    %v553 = vlaneseq
    %v554 = vshrl.u32 %v553, 7
    %v555 = vsub.s32 %v552, %v554
    %v556 = vrot.slane %v546, %v555
    %v558 = vunpack.c.l.s4 1966171168
    %v559 = vunpack.c.0.s8 %v558
    %v560 = vlaneseq
    %v561 = vshrl.u32 %v560, 7
    %v562 = vsub.s32 %v559, %v561
    %v563 = vrot.slane %v547, %v562
    %v565 = vunpack.c.l.s4 1966171168
    %v566 = vunpack.c.0.s8 %v565
    %v567 = vlaneseq
    %v568 = vshrl.u32 %v567, 7
    %v569 = vsub.s32 %v566, %v568
    %v570 = vrot.slane %v548, %v569
    %v572 = vunpack.c.l.s4 1966171168
    %v573 = vunpack.c.0.s8 %v572
    %v574 = vlaneseq
    %v575 = vshrl.u32 %v574, 7
    %v576 = vsub.s32 %v573, %v575
    %v577 = vrot.slane %v549, %v576
    %v578 = vcombine.low %v556, %v563
    %v579 = vcombine.low %v570, %v577
    %v581 = vunpack.c.l.s4 1966171168
    %v582 = vunpack.c.0.s8 %v581
    %v583 = vlaneseq
    %v584 = vshrl.u32 %v583, 7
    %v585 = vsub.s32 %v582, %v584
    %v586 = vrot.slane %v578, %v585
    %v588 = vunpack.c.l.s4 1966171168
    %v589 = vunpack.c.0.s8 %v588
    %v590 = vlaneseq
    %v591 = vshrl.u32 %v590, 7
    %v592 = vsub.s32 %v589, %v591
    %v593 = vrot.slane %v579, %v592
    %v594 = vcombine.low %v586, %v593
    %v596 = vunpack.c.l.s4 1966171168
    %v597 = vunpack.c.0.s8 %v596
    %v598 = vlaneseq
    %v599 = vshrl.u32 %v598, 7
    %v600 = vsub.s32 %v597, %v599
    %v601 = vrot.slane %v570, %v600
    %v602 = vcombine.low %v586, %v601
    %607 = vmatprep.subr.bf16.mxu0 0
    %608 = vmatpush1.bf16.msra.mxu0 %v471
    %609 = vmatprep.subr.bf16.mxu0 0
    %610 = vmatpush1.bf16.msra.mxu0 %v470
    %611 = vmatprep.subr.bf16.mxu0 0
    %612 = vmatpush1.bf16.msra.mxu0 %v469
    %613 = vmatprep.subr.bf16.mxu0 0
    %614 = vmatpush1.bf16.msra.mxu0 %v468
    %615 = vmatprep.subr.bf16.mxu0 0
    %616 = vmatpush1.bf16.msra.mxu0 %v467
    %617 = vmatprep.subr.bf16.mxu0 0
    %618 = vmatpush1.bf16.msra.mxu0 %v466
    %619 = vmatprep.subr.bf16.mxu0 0
    %620 = vmatpush1.bf16.msra.mxu0 %v465
    %621 = vmatprep.subr.bf16.mxu0 0
    %622 = vmatpush1.bf16.msra.mxu0 %v464
    %623 = vmatprep.subr.bf16.mxu0 0
    %624 = vmatpush2.bf16.msra.mxu0 0
    %625 = vmatprep.subr.bf16.mxu0 0
    %626 = vmatpush2.bf16.msra.mxu0 0
    %627 = vmatprep.subr.bf16.mxu0 0
    %628 = vmatpush2.bf16.msra.mxu0 0
    %629 = vmatprep.subr.bf16.mxu0 0
    %630 = vmatpush2.bf16.msra.mxu0 0
    %631 = vmatprep.subr.bf16.mxu0 0
    %632 = vmatpush2.bf16.msra.mxu0 0
    %633 = vmatprep.subr.bf16.mxu0 0
    %634 = vmatpush2.bf16.msra.mxu0 0
    %635 = vmatprep.subr.bf16.mxu0 0
    %636 = vmatpush2.bf16.msra.mxu0 0
    %637 = vmatprep.subr.bf16.mxu0 0
    %638 = vmatpush2.bf16.msra.mxu0 0
    %639 = vmatprep.mubr.bf16.mxu0 0
    %640 = vmatmul.mubr.bf16.gmra.mxu0 %v381
    %v641 = vpop.f32.mrf.mxu0
    %v642 = vadd.f32 %v528, %v641
    %v643 = vpop.f32.mrf.mxu0
    %v644 = vpop.f32.mrf.mxu0
    %v645 = vadd.f32 %v545, %v644
    %v646 = vpop.f32.mrf.mxu0
    %647 = vmatprep.mubr.bf16.mxu0 0
    %648 = vmatmul.mubr.bf16.gmra.mxu0 %v429
    %v649 = vpop.f32.mrf.mxu0
    %v650 = vadd.f32 %v594, %v649
    %v651 = vpop.f32.mrf.mxu0
    %v652 = vpop.f32.mrf.mxu0
    %v653 = vadd.f32 %v602, %v652
    %v654 = vpop.f32.mrf.mxu0
    %655 = vdwg.mxu0
    %v660 = vcombine.high %v642, %v642
    %v662 = vunpack.c.l.s4 1966171168
    %v663 = vunpack.c.0.s8 %v662
    %v664 = vlaneseq
    %v665 = vshrl.u32 %v664, 7
    %v666 = vsub.s32 %v663, %v665
    %v667 = vrot.slane %v642, %v666
    %v669 = vunpack.c.l.s4 1966171168
    %v670 = vunpack.c.0.s8 %v669
    %v671 = vlaneseq
    %v672 = vshrl.u32 %v671, 7
    %v673 = vsub.s32 %v670, %v672
    %v674 = vrot.slane %v660, %v673
    %v675 = vcombine.high %v667, %v667
    %v676 = vcombine.high %v674, %v674
    %v678 = vunpack.c.l.s4 1966171168
    %v679 = vunpack.c.0.s8 %v678
    %v680 = vlaneseq
    %v681 = vshrl.u32 %v680, 7
    %v682 = vsub.s32 %v679, %v681
    %v683 = vrot.slane %v667, %v682
    %v685 = vunpack.c.l.s4 1966171168
    %v686 = vunpack.c.0.s8 %v685
    %v687 = vlaneseq
    %v688 = vshrl.u32 %v687, 7
    %v689 = vsub.s32 %v686, %v688
    %v690 = vrot.slane %v674, %v689
    %v692 = vunpack.c.l.s4 1966171168
    %v693 = vunpack.c.0.s8 %v692
    %v694 = vlaneseq
    %v695 = vshrl.u32 %v694, 7
    %v696 = vsub.s32 %v693, %v695
    %v697 = vrot.slane %v675, %v696
    %v699 = vunpack.c.l.s4 1966171168
    %v700 = vunpack.c.0.s8 %v699
    %v701 = vlaneseq
    %v702 = vshrl.u32 %v701, 7
    %v703 = vsub.s32 %v700, %v702
    %v704 = vrot.slane %v676, %v703
    %v705 = vcombine.high %v683, %v683
    %v706 = vcombine.high %v690, %v690
    %v707 = vcombine.high %v697, %v697
    %v708 = vcombine.high %v704, %v704
    %v709 = vcombine.high %v645, %v645
    %v711 = vunpack.c.l.s4 1966171168
    %v712 = vunpack.c.0.s8 %v711
    %v713 = vlaneseq
    %v714 = vshrl.u32 %v713, 7
    %v715 = vsub.s32 %v712, %v714
    %v716 = vrot.slane %v645, %v715
    %v718 = vunpack.c.l.s4 1966171168
    %v719 = vunpack.c.0.s8 %v718
    %v720 = vlaneseq
    %v721 = vshrl.u32 %v720, 7
    %v722 = vsub.s32 %v719, %v721
    %v723 = vrot.slane %v709, %v722
    %v724 = vcombine.high %v716, %v716
    %v725 = vcombine.high %v723, %v723
    %v727 = vunpack.c.l.s4 1966171168
    %v728 = vunpack.c.0.s8 %v727
    %v729 = vlaneseq
    %v730 = vshrl.u32 %v729, 7
    %v731 = vsub.s32 %v728, %v730
    %v732 = vrot.slane %v716, %v731
    %v734 = vunpack.c.l.s4 1966171168
    %v735 = vunpack.c.0.s8 %v734
    %v736 = vlaneseq
    %v737 = vshrl.u32 %v736, 7
    %v738 = vsub.s32 %v735, %v737
    %v739 = vrot.slane %v723, %v738
    %v741 = vunpack.c.l.s4 1966171168
    %v742 = vunpack.c.0.s8 %v741
    %v743 = vlaneseq
    %v744 = vshrl.u32 %v743, 7
    %v745 = vsub.s32 %v742, %v744
    %v746 = vrot.slane %v724, %v745
    %v748 = vunpack.c.l.s4 1966171168
    %v749 = vunpack.c.0.s8 %v748
    %v750 = vlaneseq
    %v751 = vshrl.u32 %v750, 7
    %v752 = vsub.s32 %v749, %v751
    %v753 = vrot.slane %v725, %v752
    %v754 = vcombine.high %v732, %v732
    %v755 = vcombine.high %v739, %v739
    %v756 = vcombine.high %v746, %v746
    %v757 = vcombine.high %v753, %v753
    %v758 = vcombine.high %v650, %v650
    %v760 = vunpack.c.l.s4 1966171168
    %v761 = vunpack.c.0.s8 %v760
    %v762 = vlaneseq
    %v763 = vshrl.u32 %v762, 7
    %v764 = vsub.s32 %v761, %v763
    %v765 = vrot.slane %v650, %v764
    %v767 = vunpack.c.l.s4 1966171168
    %v768 = vunpack.c.0.s8 %v767
    %v769 = vlaneseq
    %v770 = vshrl.u32 %v769, 7
    %v771 = vsub.s32 %v768, %v770
    %v772 = vrot.slane %v758, %v771
    %v773 = vcombine.high %v765, %v765
    %v774 = vcombine.high %v772, %v772
    %v776 = vunpack.c.l.s4 1966171168
    %v777 = vunpack.c.0.s8 %v776
    %v778 = vlaneseq
    %v779 = vshrl.u32 %v778, 7
    %v780 = vsub.s32 %v777, %v779
    %v781 = vrot.slane %v765, %v780
    %v783 = vunpack.c.l.s4 1966171168
    %v784 = vunpack.c.0.s8 %v783
    %v785 = vlaneseq
    %v786 = vshrl.u32 %v785, 7
    %v787 = vsub.s32 %v784, %v786
    %v788 = vrot.slane %v772, %v787
    %v790 = vunpack.c.l.s4 1966171168
    %v791 = vunpack.c.0.s8 %v790
    %v792 = vlaneseq
    %v793 = vshrl.u32 %v792, 7
    %v794 = vsub.s32 %v791, %v793
    %v795 = vrot.slane %v773, %v794
    %v797 = vunpack.c.l.s4 1966171168
    %v798 = vunpack.c.0.s8 %v797
    %v799 = vlaneseq
    %v800 = vshrl.u32 %v799, 7
    %v801 = vsub.s32 %v798, %v800
    %v802 = vrot.slane %v774, %v801
    %v803 = vcombine.high %v781, %v781
    %v804 = vcombine.high %v788, %v788
    %v805 = vcombine.high %v795, %v795
    %v806 = vcombine.high %v802, %v802
    %v807 = vcombine.high %v653, %v653
    %v809 = vunpack.c.l.s4 1966171168
    %v810 = vunpack.c.0.s8 %v809
    %v811 = vlaneseq
    %v812 = vshrl.u32 %v811, 7
    %v813 = vsub.s32 %v810, %v812
    %v814 = vrot.slane %v653, %v813
    %v816 = vunpack.c.l.s4 1966171168
    %v817 = vunpack.c.0.s8 %v816
    %v818 = vlaneseq
    %v819 = vshrl.u32 %v818, 7
    %v820 = vsub.s32 %v817, %v819
    %v821 = vrot.slane %v807, %v820
    %v822 = vcombine.high %v814, %v814
    %v823 = vcombine.high %v821, %v821
    %v825 = vunpack.c.l.s4 1966171168
    %v826 = vunpack.c.0.s8 %v825
    %v827 = vlaneseq
    %v828 = vshrl.u32 %v827, 7
    %v829 = vsub.s32 %v826, %v828
    %v830 = vrot.slane %v814, %v829
    %v832 = vunpack.c.l.s4 1966171168
    %v833 = vunpack.c.0.s8 %v832
    %v834 = vlaneseq
    %v835 = vshrl.u32 %v834, 7
    %v836 = vsub.s32 %v833, %v835
    %v837 = vrot.slane %v821, %v836
    %v839 = vunpack.c.l.s4 1966171168
    %v840 = vunpack.c.0.s8 %v839
    %v841 = vlaneseq
    %v842 = vshrl.u32 %v841, 7
    %v843 = vsub.s32 %v840, %v842
    %v844 = vrot.slane %v822, %v843
    %v846 = vunpack.c.l.s4 1966171168
    %v847 = vunpack.c.0.s8 %v846
    %v848 = vlaneseq
    %v849 = vshrl.u32 %v848, 7
    %v850 = vsub.s32 %v847, %v849
    %v851 = vrot.slane %v823, %v850
    %v852 = vcombine.high %v830, %v830
    %v853 = vcombine.high %v844, %v844
    %v854 = vlaneseq
    %v855 = vshrl.u32 %v854, 7
    %v856 = vadd.s32 %v855, 8
    %v857 = vlaneseq
    %v858 = vand.u32 %v857, 127
    %vm859 = vcmp.ge.s32.totalorder %v858, 0
    %vm860 = vcmp.lt.s32.totalorder %v858, 8
    %vm861 = vmand %vm859, %vm860
    %vm862 = vcmp.lt.s32.totalorder %v855, 15
    %vm863 = vcmp.lt.s32.totalorder %v856, 15
    %vm864 = vmand %vm861, %vm862
    %vm865 = vmand %vm861, %vm863
    %vm866 = vcmp.ge.s32.totalorder %v858, 8
    %vm867 = vcmp.lt.s32.totalorder %v858, 16
    %vm868 = vmand %vm866, %vm867
    %vm869 = vcmp.lt.s32.totalorder %v855, 14
    %vm870 = vcmp.lt.s32.totalorder %v856, 14
    %vm871 = vmand %vm868, %vm869
    %vm872 = vmand %vm868, %vm870
    %vm873 = vmor %vm864, %vm871
    %vm874 = vmor %vm865, %vm872
    %vm875 = vcmp.ge.s32.totalorder %v858, 16
    %vm876 = vcmp.lt.s32.totalorder %v858, 24
    %vm877 = vmand %vm875, %vm876
    %vm878 = vcmp.lt.s32.totalorder %v855, 13
    %vm879 = vcmp.lt.s32.totalorder %v856, 13
    %vm880 = vmand %vm877, %vm878
    %vm881 = vmand %vm877, %vm879
    %vm882 = vmor %vm873, %vm880
    %vm883 = vmor %vm874, %vm881
    %v884 = vsel %vm882, 1, 0
    %v885 = vsel %vm883, 1, 0
    %vm886 = vcmp.eq.s32.totalorder %v884, 1
    %vm887 = vcmp.eq.s32.totalorder %v885, 1
    %v888 = vcombine.low %v683, %v697
    %v889 = vcombine.low %v705, %v707
    %v890 = vcombine.low %v690, %v704
    %v891 = vcombine.low %v706, %v708
    %v893 = vunpack.c.l.s4 1966171168
    %v894 = vunpack.c.0.s8 %v893
    %v895 = vlaneseq
    %v896 = vshrl.u32 %v895, 7
    %v897 = vsub.s32 %v894, %v896
    %v898 = vrot.slane %v888, %v897
    %v900 = vunpack.c.l.s4 1966171168
    %v901 = vunpack.c.0.s8 %v900
    %v902 = vlaneseq
    %v903 = vshrl.u32 %v902, 7
    %v904 = vsub.s32 %v901, %v903
    %v905 = vrot.slane %v889, %v904
    %v907 = vunpack.c.l.s4 1966171168
    %v908 = vunpack.c.0.s8 %v907
    %v909 = vlaneseq
    %v910 = vshrl.u32 %v909, 7
    %v911 = vsub.s32 %v908, %v910
    %v912 = vrot.slane %v890, %v911
    %v914 = vunpack.c.l.s4 1966171168
    %v915 = vunpack.c.0.s8 %v914
    %v916 = vlaneseq
    %v917 = vshrl.u32 %v916, 7
    %v918 = vsub.s32 %v915, %v917
    %v919 = vrot.slane %v891, %v918
    %v920 = vcombine.low %v898, %v905
    %v921 = vcombine.low %v912, %v919
    %v923 = vunpack.c.l.s4 1966171168
    %v924 = vunpack.c.0.s8 %v923
    %v925 = vlaneseq
    %v926 = vshrl.u32 %v925, 7
    %v927 = vsub.s32 %v924, %v926
    %v928 = vrot.slane %v920, %v927
    %v930 = vunpack.c.l.s4 1966171168
    %v931 = vunpack.c.0.s8 %v930
    %v932 = vlaneseq
    %v933 = vshrl.u32 %v932, 7
    %v934 = vsub.s32 %v931, %v933
    %v935 = vrot.slane %v921, %v934
    %v936 = vcombine.low %v928, %v935
    %v937 = vcombine.low %v732, %v746
    %v938 = vcombine.low %v754, %v756
    %v939 = vcombine.low %v739, %v753
    %v941 = vunpack.c.l.s4 1966171168
    %v942 = vunpack.c.0.s8 %v941
    %v943 = vlaneseq
    %v944 = vshrl.u32 %v943, 7
    %v945 = vsub.s32 %v942, %v944
    %v946 = vrot.slane %v937, %v945
    %v948 = vunpack.c.l.s4 1966171168
    %v949 = vunpack.c.0.s8 %v948
    %v950 = vlaneseq
    %v951 = vshrl.u32 %v950, 7
    %v952 = vsub.s32 %v949, %v951
    %v953 = vrot.slane %v938, %v952
    %v955 = vunpack.c.l.s4 1966171168
    %v956 = vunpack.c.0.s8 %v955
    %v957 = vlaneseq
    %v958 = vshrl.u32 %v957, 7
    %v959 = vsub.s32 %v956, %v958
    %v960 = vrot.slane %v939, %v959
    %v962 = vunpack.c.l.s4 1966171168
    %v963 = vunpack.c.0.s8 %v962
    %v964 = vlaneseq
    %v965 = vshrl.u32 %v964, 7
    %v966 = vsub.s32 %v963, %v965
    %v967 = vrot.slane %v755, %v966
    %v968 = vcombine.low %v946, %v953
    %v969 = vcombine.low %v960, %v967
    %v971 = vunpack.c.l.s4 1966171168
    %v972 = vunpack.c.0.s8 %v971
    %v973 = vlaneseq
    %v974 = vshrl.u32 %v973, 7
    %v975 = vsub.s32 %v972, %v974
    %v976 = vrot.slane %v968, %v975
    %v978 = vunpack.c.l.s4 1966171168
    %v979 = vunpack.c.0.s8 %v978
    %v980 = vlaneseq
    %v981 = vshrl.u32 %v980, 7
    %v982 = vsub.s32 %v979, %v981
    %v983 = vrot.slane %v969, %v982
    %v984 = vcombine.low %v976, %v983
    %v985 = vcombine.low %v757, %v781
    %v986 = vcombine.low %v795, %v803
    %v987 = vcombine.low %v805, %v788
    %v988 = vcombine.low %v802, %v804
    %v990 = vunpack.c.l.s4 1966171168
    %v991 = vunpack.c.0.s8 %v990
    %v992 = vlaneseq
    %v993 = vshrl.u32 %v992, 7
    %v994 = vsub.s32 %v991, %v993
    %v995 = vrot.slane %v985, %v994
    %v997 = vunpack.c.l.s4 1966171168
    %v998 = vunpack.c.0.s8 %v997
    %v999 = vlaneseq
    %v1000 = vshrl.u32 %v999, 7
    %v1001 = vsub.s32 %v998, %v1000
    %v1002 = vrot.slane %v986, %v1001
    %v1004 = vunpack.c.l.s4 1966171168
    %v1005 = vunpack.c.0.s8 %v1004
    %v1006 = vlaneseq
    %v1007 = vshrl.u32 %v1006, 7
    %v1008 = vsub.s32 %v1005, %v1007
    %v1009 = vrot.slane %v987, %v1008
    %v1011 = vunpack.c.l.s4 1966171168
    %v1012 = vunpack.c.0.s8 %v1011
    %v1013 = vlaneseq
    %v1014 = vshrl.u32 %v1013, 7
    %v1015 = vsub.s32 %v1012, %v1014
    %v1016 = vrot.slane %v988, %v1015
    %v1017 = vcombine.low %v995, %v1002
    %v1018 = vcombine.low %v1009, %v1016
    %v1020 = vunpack.c.l.s4 1966171168
    %v1021 = vunpack.c.0.s8 %v1020
    %v1022 = vlaneseq
    %v1023 = vshrl.u32 %v1022, 7
    %v1024 = vsub.s32 %v1021, %v1023
    %v1025 = vrot.slane %v1017, %v1024
    %v1027 = vunpack.c.l.s4 1966171168
    %v1028 = vunpack.c.0.s8 %v1027
    %v1029 = vlaneseq
    %v1030 = vshrl.u32 %v1029, 7
    %v1031 = vsub.s32 %v1028, %v1030
    %v1032 = vrot.slane %v1018, %v1031
    %v1033 = vcombine.low %v1025, %v1032
    %v1034 = vcombine.low %v806, %v830
    %v1035 = vcombine.low %v844, %v852
    %v1036 = vcombine.low %v853, %v837
    %v1038 = vunpack.c.l.s4 1966171168
    %v1039 = vunpack.c.0.s8 %v1038
    %v1040 = vlaneseq
    %v1041 = vshrl.u32 %v1040, 7
    %v1042 = vsub.s32 %v1039, %v1041
    %v1043 = vrot.slane %v1034, %v1042
    %v1045 = vunpack.c.l.s4 1966171168
    %v1046 = vunpack.c.0.s8 %v1045
    %v1047 = vlaneseq
    %v1048 = vshrl.u32 %v1047, 7
    %v1049 = vsub.s32 %v1046, %v1048
    %v1050 = vrot.slane %v1035, %v1049
    %v1052 = vunpack.c.l.s4 1966171168
    %v1053 = vunpack.c.0.s8 %v1052
    %v1054 = vlaneseq
    %v1055 = vshrl.u32 %v1054, 7
    %v1056 = vsub.s32 %v1053, %v1055
    %v1057 = vrot.slane %v1036, %v1056
    %v1059 = vunpack.c.l.s4 1966171168
    %v1060 = vunpack.c.0.s8 %v1059
    %v1061 = vlaneseq
    %v1062 = vshrl.u32 %v1061, 7
    %v1063 = vsub.s32 %v1060, %v1062
    %v1064 = vrot.slane %v851, %v1063
    %v1065 = vcombine.low %v1043, %v1050
    %v1066 = vcombine.low %v1057, %v1064
    %v1068 = vunpack.c.l.s4 1966171168
    %v1069 = vunpack.c.0.s8 %v1068
    %v1070 = vlaneseq
    %v1071 = vshrl.u32 %v1070, 7
    %v1072 = vsub.s32 %v1069, %v1071
    %v1073 = vrot.slane %v1065, %v1072
    %v1075 = vunpack.c.l.s4 1966171168
    %v1076 = vunpack.c.0.s8 %v1075
    %v1077 = vlaneseq
    %v1078 = vshrl.u32 %v1077, 7
    %v1079 = vsub.s32 %v1076, %v1078
    %v1080 = vrot.slane %v1066, %v1079
    %v1081 = vcombine.low %v1073, %v1080
    %v1086 = vsel %vm886, %v936, -3.4028235e+38
    %v1087 = vsel %vm887, %v984, -3.4028235e+38
    %v1088 = vsel %vm886, %v1033, -3.4028235e+38
    %v1089 = vsel %vm887, %v1081, -3.4028235e+38
    %vm1090 = vcmask 195584
    %v1091 = vsel %vm1090, %v1086, -inf
    %vm1092 = vcmask 194560
    %v1093 = vsel %vm1092, %v1087, -inf
    %v1094 = vmax.f32 %v1091, %v1093
    %v1095 = vrot.slane %v1094, 4
    %v1096 = vmax.f32 %v1094, %v1095
    %v1097 = vrot.slane %v1096, 2
    %v1098 = vmax.f32 %v1096, %v1097
    %v1099 = vrot.slane %v1098, 1
    %v1100 = vmax.f32 %v1098, %v1099
    %v1101 = vsel %vm1090, %v1088, -inf
    %v1102 = vsel %vm1092, %v1089, -inf
    %v1103 = vmax.f32 %v1101, %v1102
    %v1104 = vrot.slane %v1103, 4
    %v1105 = vmax.f32 %v1103, %v1104
    %v1106 = vrot.slane %v1105, 2
    %v1107 = vmax.f32 %v1105, %v1106
    %v1108 = vrot.slane %v1107, 1
    %v1109 = vmax.f32 %v1107, %v1108
    %v1110 = vpack.c.bf16 %v1100, %v1100
    %v1111 = vpack.c.bf16 %v1109, %v1109
    %v1112 = vld [vmem:[%s3] sm:$0xf]
    %v1113 = vld [vmem:[%s3 + $0x4] sm:$0xf]
    %v1114 = vld [vmem:[%s3 + $0x8] sm:$0xf]
    %v1115 = vld [vmem:[%s4] sm:$0x1]
    %v1117 = vlaneseq
    %v1118 = vshrl.u32 %v1117, 7
    %v1119 = vsub.s32 0, %v1118
    %v1120 = vrot.slane %v1115, %v1119
    %v1124 = vunpack.c.l.b16 %v1110
    %v1125 = vunpack.c.l.b16 %v1111
    %vm1126 = vcmask 1041409
    %v1127 = vsel %vm1126, %v1125, %v1124
    %v1128 = vpack.c.b16 %v1127, %v1127
    %v1132 = vunpack.c.l.b16 %v1112
    %v1133 = vunpack.c.l.b16 %v1113
    %v1134 = vunpack.c.l.b16 %v1114
    %v1135 = vpack.c.b16 %v1133, %v1132
    %v1136 = vpack.c.b16 %v1134, %v1134
    %v1139 = vsel %vm1090, %v1128, 0
    %vm1141 = vcmask 1043456
    %v1143 = vsel %vm1141, %v1136, 0
    %1145 = vmatprep.subr.bf16.mxu0 0
    %1146 = vmatpush1.bf16.msra.mxu0 0
    %1147 = vmatprep.subr.bf16.mxu0 0
    %1148 = vmatpush1.bf16.msra.mxu0 0
    %1149 = vmatprep.subr.bf16.mxu0 0
    %1150 = vmatpush1.bf16.msra.mxu0 0
    %1151 = vmatprep.subr.bf16.mxu0 0
    %1152 = vmatpush1.bf16.msra.mxu0 0
    %1153 = vmatprep.subr.bf16.mxu0 0
    %1154 = vmatpush1.bf16.msra.mxu0 0
    %1155 = vmatprep.subr.bf16.mxu0 0
    %1156 = vmatpush1.bf16.msra.mxu0 0
    %1157 = vmatprep.subr.bf16.mxu0 0
    %1158 = vmatpush1.bf16.msra.mxu0 %v1143
    %1159 = vmatprep.subr.bf16.mxu0 0
    %1160 = vmatpush1.bf16.msra.mxu0 %v1135
    %1161 = vmatprep.subr.bf16.mxu0 0
    %1162 = vmatpush2.bf16.msra.mxu0 0
    %1163 = vmatprep.subr.bf16.mxu0 0
    %1164 = vmatpush2.bf16.msra.mxu0 0
    %1165 = vmatprep.subr.bf16.mxu0 0
    %1166 = vmatpush2.bf16.msra.mxu0 0
    %1167 = vmatprep.subr.bf16.mxu0 0
    %1168 = vmatpush2.bf16.msra.mxu0 0
    %1169 = vmatprep.subr.bf16.mxu0 0
    %1170 = vmatpush2.bf16.msra.mxu0 0
    %1171 = vmatprep.subr.bf16.mxu0 0
    %1172 = vmatpush2.bf16.msra.mxu0 0
    %1173 = vmatprep.subr.bf16.mxu0 0
    %1174 = vmatpush2.bf16.msra.mxu0 0
    %1175 = vmatprep.subr.bf16.mxu0 0
    %1176 = vmatpush2.bf16.msra.mxu0 0
    %1177 = vmatprep.mubr.bf16.mxu0 0
    %1178 = vmatmul.mubr.bf16.gmra.mxu0 %v1139
    %v1179 = vpop.f32.mrf.mxu0
    %v1180 = vadd.f32 %v1120, %v1179
    %v1181 = vpop.f32.mrf.mxu0
    %v1182 = vpop.f32.mrf.mxu0
    %v1183 = vpop.f32.mrf.mxu0
    %1184 = vdwg.mxu0
    %vm1185 = vcmask 33792
    %1186 = vst.msk [vmem:[#allocation2] sm:$0x3] %vm1185, %v1180
    // Predicated region
    $region22: #{tpu_custom_call.1} parent=1 // pred_check
      _
    $region23: #{tpu_custom_call.1} parent=1 // pred_check_branch
      %1188 = sbr.rel (0) target = $region25
    $region24: #{tpu_custom_call.1} parent=1 // pred_region
      %s1190 = ssub.s32 32, 32
      %1191 = vsyncadd [#allocation3], %s1190
      %s1193 = sshll.u32 [#allocation2], 4
      %s1194 = int_to_ptr.vmem [resolvable:$true] %s1193
      %1196 = dma.vmem_to_hbm [thread:$0]  %s1194, 32, %s5, [#allocation3]
    $region25: #{tpu_custom_call.1} parent=1 // pred_fallthru
      _
    // Predicated region
    $region26: #{tpu_custom_call.1} parent=1 // pred_check
      _
    $region27: #{tpu_custom_call.1} parent=1 // pred_check_branch
      %1198 = sbr.rel (0) target = $region29
    $region28: #{tpu_custom_call.1} parent=1 // pred_region
      %1199 = dma.done [#allocation3], 32
    $region29: #{tpu_custom_call.1} parent=1 // pred_fallthru
      _
    %1200 = vsyncpa [#allocation3], 1

</llo_original>
